<compile_context>
chip_gen: v6e
topology: v6e:2x2x1
jax: 0.10.0
libtpu: 0.0.40
codegen_flags: <defaults>
</compile_context>

<pallas_src>
import jax
import jax.numpy as jnp
from jax.experimental import pallas as pl
from jax.experimental.pallas import tpu as pltpu

_LANE = 128          # lane-dense padded feature width
_IN = 20             # real input feature width
_TB_DEFAULT = 2048   # batch tile (rows per grid step), multiple of 8


# --------------------------------------------------------------------------
# Single fused kernel: relu(x) -> fc1+relu -> fc2+relu -> fc3+softplus
# Runs once per batch tile; weights/biases are the same VMEM block every step.
# --------------------------------------------------------------------------
def _fused_mlp_kernel(x_ref, w1_ref, b1_ref, w2_ref, b2_ref, w3_ref, b3_ref,
                      o_ref):
    # relu on the flattened input (matches F.relu(x.view(-1, 20)))
    x = jnp.maximum(x_ref[...], 0.0)

    h1 = jnp.maximum(
        jnp.dot(x, w1_ref[...], preferred_element_type=jnp.float32)
        + b1_ref[...],
        0.0,
    )
    h2 = jnp.maximum(
        jnp.dot(h1, w2_ref[...], preferred_element_type=jnp.float32)
        + b2_ref[...],
        0.0,
    )
    z = (
        jnp.dot(h2, w3_ref[...], preferred_element_type=jnp.float32)
        + b3_ref[...]
    )

    # Softplus (torch defaults beta=1, threshold=20): linear above threshold,
    # numerically stable log1p(exp(-|z|)) + max(z, 0) otherwise (strictly > 0).
    sp = jnp.log1p(jnp.exp(-jnp.abs(z))) + jnp.maximum(z, 0.0)
    o_ref[...] = jnp.where(z > 20.0, z, sp)


# --------------------------------------------------------------------------
# Parameters (torch Linear layout, then padded once to 128-lane slabs)
# --------------------------------------------------------------------------
def _pad_to(a, shape):
    return jnp.pad(a, [(0, t - s) for s, t in zip(a.shape, shape)])


def init_params(key):
    ks = jax.random.split(key, 6)

    def normal(k, shape, scale):
        return (scale * jax.random.normal(k, shape)).astype(jnp.float32)

    # torch nn.Linear layout: weight (out_features, in_features), bias (out,)
    w1 = normal(ks[0], (40, 20), 0.2)
    b1 = normal(ks[1], (40,), 0.1)
    w2 = normal(ks[2], (80, 40), 0.1)
    b2 = normal(ks[3], (80,), 0.1)
    w3 = normal(ks[4], (2, 80), 0.1)
    b3 = normal(ks[5], (2,), 0.1)

    raw = {"w1": w1, "b1": b1, "w2": w2, "b2": b2, "w3": w3, "b3": b3}

    # Zero-pad once at init: (in, out) matmul form, out dims -> 128 lanes,
    # inner dims padded to match the previous layer's padded width.
    # TODO(synk): for bandwidth-bound large-batch serving on v6e/v7x, store
    # these (and the activations) as bf16 and keep f32 MXU accumulation.
    padded = {
        "w1": _pad_to(w1.T, (_IN, _LANE)),            # (20, 128)
        "b1": _pad_to(b1.reshape(1, -1), (1, _LANE)),
        "w2": _pad_to(w2.T, (_LANE, _LANE)),          # (128, 128)
        "b2": _pad_to(b2.reshape(1, -1), (1, _LANE)),
        "w3": _pad_to(w3.T, (_LANE, _LANE)),          # (128, 128)
        "b3": _pad_to(b3.reshape(1, -1), (1, _LANE)),
    }
    return raw, padded


# --------------------------------------------------------------------------
# Forward pass (single pallas_call, batch-tiled grid)
# --------------------------------------------------------------------------
def _round_up(n, m):
    return ((n + m - 1) // m) * m


@jax.jit
def comparison_fc_small_forward(x, padded):
    xf = x.reshape(-1, _IN).astype(jnp.float32)       # x.view(-1, 20)
    B = xf.shape[0]

    # Batch tile: multiple of 8 sublanes, capped at _TB_DEFAULT rows.
    TB = min(_TB_DEFAULT, _round_up(max(B, 1), 8))
    B_pad = _round_up(B, TB)
    if B_pad != B:
        xf = jnp.pad(xf, ((0, B_pad - B), (0, 0)))     # full, unmasked tiles
    n_tiles = B_pad // TB

    # bytes_accessed reflects the (8,128)-tiled HBM layout: the 20-wide f32
    # input rows and the 128-wide output rows each occupy 512 B/row in HBM.
    weight_bytes = 4 * (_IN * _LANE + 2 * _LANE * _LANE + 3 * _LANE)
    cost = pl.CostEstimate(
        flops=2 * B_pad * (_IN * _LANE + _LANE * _LANE + _LANE * _LANE),
        transcendentals=2 * B_pad * _LANE,             # exp + log1p in softplus
        bytes_accessed=B_pad * 512 + B_pad * 512 + weight_bytes,
    )

    full = lambda i: (0, 0)    # weights/biases: same VMEM block every step
    tile = lambda i: (i, 0)    # activations: march down the batch

    out_padded = pl.pallas_call(
        _fused_mlp_kernel,
        out_shape=jax.ShapeDtypeStruct((B_pad, _LANE), jnp.float32),
        grid_spec=pltpu.PrefetchScalarGridSpec(
            num_scalar_prefetch=0,
            grid=(n_tiles,),
            in_specs=[
                pl.BlockSpec((TB, _IN), tile),          # x tile
                pl.BlockSpec((_IN, _LANE), full),       # w1
                pl.BlockSpec((1, _LANE), full),         # b1
                pl.BlockSpec((_LANE, _LANE), full),     # w2
                pl.BlockSpec((1, _LANE), full),         # b2
                pl.BlockSpec((_LANE, _LANE), full),     # w3
                pl.BlockSpec((1, _LANE), full),         # b3
            ],
            out_specs=pl.BlockSpec((TB, _LANE), tile),
        ),
        cost_estimate=cost,
        compiler_params=pltpu.CompilerParams(
            dimension_semantics=("parallel",),          # megacore on v7x
            vmem_limit_bytes=32 * 1024 * 1024,
        ),
    )(
        xf,
        padded["w1"], padded["b1"],
        padded["w2"], padded["b2"],
        padded["w3"], padded["b3"],
    )
    # Real logits live in lanes [0, 2); padded rows/lanes are dropped here.
    # TODO(synk): for huge batches, compact 64 rows x 2 logits into one
    # 128-lane output row in-kernel (XLU shuffle) to cut output HBM 64x.
    return out_padded[:B, :2]


# --------------------------------------------------------------------------
# Pure-JAX reference (for correctness check)
# --------------------------------------------------------------------------
def reference_forward(x, raw):
    h = jnp.maximum(x.reshape(-1, _IN).astype(jnp.float32), 0.0)
    h = jnp.maximum(h @ raw["w1"].T + raw["b1"], 0.0)
    h = jnp.maximum(h @ raw["w2"].T + raw["b2"], 0.0)
    z = h @ raw["w3"].T + raw["b3"]
    sp = jnp.log1p(jnp.exp(-jnp.abs(z))) + jnp.maximum(z, 0.0)
    return jnp.where(z > 20.0, z, sp)


if __name__ == "__main__":
    key = jax.random.PRNGKey(0)
    k_in, k_p = jax.random.split(key)

    # (2, 4, 20) exercises the x.view(-1, 20) flattening -> 8 rows of 20.
    x = jax.random.normal(k_in, (2, 4, 20), dtype=jnp.float32)
    raw, padded = init_params(k_p)

    out = comparison_fc_small_forward(x, padded)
    out = jax.block_until_ready(out)

    assert out.shape == (8, 2)
    ref = reference_forward(x, raw)
    assert jnp.allclose(out, ref, atol=1e-5, rtol=1e-5)
    # softplus output is strictly positive (log1p form never underflows to 0)
    assert bool(jnp.all(out > 0.0))
    print("KERNEL_OK")
</pallas_src>

<mosaic_0001>
module attributes {stable_mosaic.version = 11 : i64} {
  func.func @_fused_mlp_kernel(%arg0: i32, %arg1: memref<8x20xf32, #tpu.memory_space<vmem>>, %arg2: memref<20x128xf32, #tpu.memory_space<vmem>>, %arg3: memref<1x128xf32, #tpu.memory_space<vmem>>, %arg4: memref<128x128xf32, #tpu.memory_space<vmem>>, %arg5: memref<1x128xf32, #tpu.memory_space<vmem>>, %arg6: memref<128x128xf32, #tpu.memory_space<vmem>>, %arg7: memref<1x128xf32, #tpu.memory_space<vmem>>, %arg8: memref<8x128xf32, #tpu.memory_space<vmem>>) attributes {dimension_semantics = [#tpu.dimension_semantics<parallel>], iteration_bounds = array<i64: 1>, scalar_prefetch = 0 : i64, scratch_operands = 0 : i64, tpu.core_type = #tpu.core_type<tc>, window_params = [{transform_indices = @transform_0, window_bounds = array<i64: 8, 20>}, {pipeline_mode = #tpu.pipeline_mode<synchronous>, transform_indices = @transform_1, window_bounds = array<i64: 20, 128>}, {pipeline_mode = #tpu.pipeline_mode<synchronous>, transform_indices = @transform_2, window_bounds = array<i64: 1, 128>}, {pipeline_mode = #tpu.pipeline_mode<synchronous>, transform_indices = @transform_3, window_bounds = array<i64: 128, 128>}, {pipeline_mode = #tpu.pipeline_mode<synchronous>, transform_indices = @transform_4, window_bounds = array<i64: 1, 128>}, {pipeline_mode = #tpu.pipeline_mode<synchronous>, transform_indices = @transform_5, window_bounds = array<i64: 128, 128>}, {pipeline_mode = #tpu.pipeline_mode<synchronous>, transform_indices = @transform_6, window_bounds = array<i64: 1, 128>}, {transform_indices = @transform_7, window_bounds = array<i64: 8, 128>}]} {
    %c0 = arith.constant 0 : index
    %c0_0 = arith.constant 0 : index
    %0 = vector.load %arg1[%c0, %c0_0] : memref<8x20xf32, #tpu.memory_space<vmem>>, vector<8x20xf32>
    %cst = arith.constant 0.000000e+00 : f32
    %1 = vector.broadcast %cst : f32 to vector<8x20xf32>
    %2 = arith.maximumf %0, %1 : vector<8x20xf32>
    %c0_1 = arith.constant 0 : index
    %c0_2 = arith.constant 0 : index
    %3 = vector.load %arg2[%c0_1, %c0_2] : memref<20x128xf32, #tpu.memory_space<vmem>>, vector<20x128xf32>
    %cst_3 = arith.constant dense<0.000000e+00> : vector<8x128xf32>
    %4 = tpu.matmul %2, %3, %cst_3 {dimension_numbers = #tpu.dot_dimension_numbers<[1], [0], [0], [1], [0, 0, 1, 1], [], []>} : vector<8x20xf32>, vector<20x128xf32>, vector<8x128xf32> -> vector<8x128xf32>
    %c0_4 = arith.constant 0 : index
    %c0_5 = arith.constant 0 : index
    %5 = vector.load %arg3[%c0_4, %c0_5] : memref<1x128xf32, #tpu.memory_space<vmem>>, vector<1x128xf32>
    %6 = vector.broadcast %5 : vector<1x128xf32> to vector<8x128xf32>
    %7 = arith.addf %4, %6 : vector<8x128xf32>
    %cst_6 = arith.constant 0.000000e+00 : f32
    %8 = vector.broadcast %cst_6 : f32 to vector<8x128xf32>
    %9 = arith.maximumf %7, %8 : vector<8x128xf32>
    %c0_7 = arith.constant 0 : index
    %c0_8 = arith.constant 0 : index
    %10 = vector.load %arg4[%c0_7, %c0_8] : memref<128x128xf32, #tpu.memory_space<vmem>>, vector<128x128xf32>
    %cst_9 = arith.constant dense<0.000000e+00> : vector<8x128xf32>
    %11 = tpu.matmul %9, %10, %cst_9 {dimension_numbers = #tpu.dot_dimension_numbers<[1], [0], [0], [1], [0, 0, 1, 1], [], []>} : vector<8x128xf32>, vector<128x128xf32>, vector<8x128xf32> -> vector<8x128xf32>
    %c0_10 = arith.constant 0 : index
    %c0_11 = arith.constant 0 : index
    %12 = vector.load %arg5[%c0_10, %c0_11] : memref<1x128xf32, #tpu.memory_space<vmem>>, vector<1x128xf32>
    %13 = vector.broadcast %12 : vector<1x128xf32> to vector<8x128xf32>
    %14 = arith.addf %11, %13 : vector<8x128xf32>
    %cst_12 = arith.constant 0.000000e+00 : f32
    %15 = vector.broadcast %cst_12 : f32 to vector<8x128xf32>
    %16 = arith.maximumf %14, %15 : vector<8x128xf32>
    %c0_13 = arith.constant 0 : index
    %c0_14 = arith.constant 0 : index
    %17 = vector.load %arg6[%c0_13, %c0_14] : memref<128x128xf32, #tpu.memory_space<vmem>>, vector<128x128xf32>
    %cst_15 = arith.constant dense<0.000000e+00> : vector<8x128xf32>
    %18 = tpu.matmul %16, %17, %cst_15 {dimension_numbers = #tpu.dot_dimension_numbers<[1], [0], [0], [1], [0, 0, 1, 1], [], []>} : vector<8x128xf32>, vector<128x128xf32>, vector<8x128xf32> -> vector<8x128xf32>
    %c0_16 = arith.constant 0 : index
    %c0_17 = arith.constant 0 : index
    %19 = vector.load %arg7[%c0_16, %c0_17] : memref<1x128xf32, #tpu.memory_space<vmem>>, vector<1x128xf32>
    %20 = vector.broadcast %19 : vector<1x128xf32> to vector<8x128xf32>
    %21 = arith.addf %18, %20 : vector<8x128xf32>
    %22 = math.absf %21 : vector<8x128xf32>
    %cst_18 = arith.constant 0.000000e+00 : f32
    %23 = vector.broadcast %cst_18 : f32 to vector<8x128xf32>
    %24 = arith.subf %23, %22 : vector<8x128xf32>
    %25 = math.exp %24 : vector<8x128xf32>
    %26 = math.log1p %25 : vector<8x128xf32>
    %cst_19 = arith.constant 0.000000e+00 : f32
    %27 = vector.broadcast %cst_19 : f32 to vector<8x128xf32>
    %28 = arith.maximumf %21, %27 : vector<8x128xf32>
    %29 = arith.addf %26, %28 : vector<8x128xf32>
    %cst_20 = arith.constant 2.000000e+01 : f32
    %30 = vector.broadcast %cst_20 : f32 to vector<8x128xf32>
    %31 = arith.cmpf ogt, %21, %30 : vector<8x128xf32>
    %32 = arith.select %31, %21, %29 : vector<8x128xi1>, vector<8x128xf32>
    %c0_21 = arith.constant 0 : index
    %c0_22 = arith.constant 0 : index
    %33 = vector.load %arg8[%c0_21, %c0_22] : memref<8x128xf32, #tpu.memory_space<vmem>>, vector<8x128xf32>
    tpu.vector_store %arg8[%c0_21, %c0_22], %32 {strides = array<i32>} : memref<8x128xf32, #tpu.memory_space<vmem>>, vector<8x128xf32>,
    return
  }
  func.func @transform_0(%arg0: i32) -> (i32, i32) {
    %c0_i32 = arith.constant 0 : i32
    %c0_i32_0 = arith.constant 0 : i32
    return %arg0, %c0_i32 : i32, i32
  }
  func.func @transform_1(%arg0: i32) -> (i32, i32) {
    %c0_i32 = arith.constant 0 : i32
    %c0_i32_0 = arith.constant 0 : i32
    %c0_i32_1 = arith.constant 0 : i32
    return %c0_i32, %c0_i32_0 : i32, i32
  }
  func.func @transform_2(%arg0: i32) -> (i32, i32) {
    %c0_i32 = arith.constant 0 : i32
    %c0_i32_0 = arith.constant 0 : i32
    %c0_i32_1 = arith.constant 0 : i32
    return %c0_i32, %c0_i32_0 : i32, i32
  }
  func.func @transform_3(%arg0: i32) -> (i32, i32) {
    %c0_i32 = arith.constant 0 : i32
    %c0_i32_0 = arith.constant 0 : i32
    %c0_i32_1 = arith.constant 0 : i32
    return %c0_i32, %c0_i32_0 : i32, i32
  }
  func.func @transform_4(%arg0: i32) -> (i32, i32) {
    %c0_i32 = arith.constant 0 : i32
    %c0_i32_0 = arith.constant 0 : i32
    %c0_i32_1 = arith.constant 0 : i32
    return %c0_i32, %c0_i32_0 : i32, i32
  }
  func.func @transform_5(%arg0: i32) -> (i32, i32) {
    %c0_i32 = arith.constant 0 : i32
    %c0_i32_0 = arith.constant 0 : i32
    %c0_i32_1 = arith.constant 0 : i32
    return %c0_i32, %c0_i32_0 : i32, i32
  }
  func.func @transform_6(%arg0: i32) -> (i32, i32) {
    %c0_i32 = arith.constant 0 : i32
    %c0_i32_0 = arith.constant 0 : i32
    %c0_i32_1 = arith.constant 0 : i32
    return %c0_i32, %c0_i32_0 : i32, i32
  }
  func.func @transform_7(%arg0: i32) -> (i32, i32) {
    %c0_i32 = arith.constant 0 : i32
    %c0_i32_0 = arith.constant 0 : i32
    return %arg0, %c0_i32 : i32, i32
  }
}

</mosaic_0001>

<llo_original>
// kernel: comparison_fc_small_forward.1
$region0: #{comparison_fc_small_forward.1}
  #allocation0 [shape = 'u32[]', space=smem, size = 0x4, offset = 0x4, fixed_abs, tag = 'smem constant byte address 0x4 - core index']
  #allocation1 [shape = 'u32[144,128]{1,0:T(1,128)}', space=vmem, size = 0x12000, scoped, tag = 'internal scratch']
  %s0 = inlined_call_operand.hbm [shape: f32[8,20], index: 0, kind: input, shape index: {}]
  %s1 = inlined_call_operand.hbm [shape: f32[20,128], index: 1, kind: input, shape index: {}]
  %s2 = inlined_call_operand.vmem [shape: f32[1,128], index: 2, kind: input, shape index: {}]
  %s3 = inlined_call_operand.hbm [shape: f32[128,128], index: 3, kind: input, shape index: {}]
  %s4 = inlined_call_operand.vmem [shape: f32[1,128], index: 4, kind: input, shape index: {}]
  %s5 = inlined_call_operand.hbm [shape: f32[128,128], index: 5, kind: input, shape index: {}]
  %s6 = inlined_call_operand.vmem [shape: f32[1,128], index: 6, kind: input, shape index: {}]
  %s7 = inlined_call_operand.vmem [shape: f32[8,128], index: 7, kind: output, shape index: {}]
  %s8 = sld [smem:[#allocation0]]
  $region54: #{comparison_fc_small_forward.1} parent=0
    _
  %s10 = ssub.s32 1, %s8
  %s11 = scalar_select 0, %s10, %s8
  $region1: #{comparison_fc_small_forward.1} parent=0
    #allocation2 [shape = 'u8[4096]{0}', space=vmem, size = 0x1000, scoped, tag = 'input window, operand 0, single buffered']
    #allocation3 [shape = 's32[1]{0}', space=sflag, size = 0x4, scoped, tag = 'scoped memory for comparison_fc_small_forward.1']
    #allocation4 [shape = 'u8[12288]{0}', space=vmem, size = 0x3000, scoped, tag = 'input window, operand 1, single buffered']
    #allocation5 [shape = 's32[1]{0}', space=sflag, size = 0x4, scoped, tag = 'scoped memory for comparison_fc_small_forward.1']
    #allocation6 [shape = 'u8[65536]{0}', space=vmem, size = 0x10000, scoped, tag = 'input window, operand 3, single buffered']
    #allocation7 [shape = 'u8[65536]{0}', space=vmem, size = 0x10000, scoped, tag = 'input window, operand 5, single buffered']
    #allocation8 [shape = 's32[1]{0}', space=sflag, size = 0x4, scoped, tag = 'scoped memory for comparison_fc_small_forward.1']
    %12 = vsyncpa [#allocation3], 0
    %13 = vsyncpa [#allocation5], 0
    %14 = vsyncpa [#allocation8], 0
    // Predicated region
    $region2: #{comparison_fc_small_forward.1} parent=1 // pred_check
      _
    $region3: #{comparison_fc_small_forward.1} parent=1 // pred_check_branch
      %16 = sbr.rel (0) target = $region5
    $region4: #{comparison_fc_small_forward.1} parent=1 // pred_region
      %s18 = ssub.s32 128, 128
      %19 = vsyncadd [#allocation3], %s18
      %s21 = sshll.u32 [#allocation2], 4
      %s22 = int_to_ptr.vmem [resolvable:$true] %s21
      %24 = dma.hbm_to_vmem [thread:$0]  %s0, 128, %s22, [#allocation3]
    $region5: #{comparison_fc_small_forward.1} parent=1 // pred_fallthru
      _
    // Predicated region
    $region6: #{comparison_fc_small_forward.1} parent=1 // pred_check
      _
    $region7: #{comparison_fc_small_forward.1} parent=1 // pred_check_branch
      %26 = sbr.rel (0) target = $region9
    $region8: #{comparison_fc_small_forward.1} parent=1 // pred_region
      %s28 = ssub.s32 384, 384
      %29 = vsyncadd [#allocation5], %s28
      %s30 = sshll.u32 [#allocation4], 4
      %s31 = int_to_ptr.vmem [resolvable:$true] %s30
      %36 = dma.hbm_to_vmem [thread:$0]  %s1, 384, %s31, [#allocation5], 128, 128, 8
    $region9: #{comparison_fc_small_forward.1} parent=1 // pred_fallthru
      _
    // Predicated region
    $region10: #{comparison_fc_small_forward.1} parent=1 // pred_check
      _
    $region11: #{comparison_fc_small_forward.1} parent=1 // pred_check_branch
      %38 = sbr.rel (0) target = $region13
    $region12: #{comparison_fc_small_forward.1} parent=1 // pred_region
      _
    $region13: #{comparison_fc_small_forward.1} parent=1 // pred_fallthru
      _
    // Predicated region
    $region14: #{comparison_fc_small_forward.1} parent=1 // pred_check
      _
    $region15: #{comparison_fc_small_forward.1} parent=1 // pred_check_branch
      %40 = sbr.rel (0) target = $region17
    $region16: #{comparison_fc_small_forward.1} parent=1 // pred_region
      %s42 = ssub.s32 2048, 2048
      %43 = vsyncadd [#allocation5], %s42
      %s44 = sshll.u32 [#allocation6], 4
      %s45 = int_to_ptr.vmem [resolvable:$true] %s44
      %50 = dma.hbm_to_vmem [thread:$0]  %s3, 2048, %s45, [#allocation5], 128, 128, 8
    $region17: #{comparison_fc_small_forward.1} parent=1 // pred_fallthru
      _
    // Predicated region
    $region18: #{comparison_fc_small_forward.1} parent=1 // pred_check
      _
    $region19: #{comparison_fc_small_forward.1} parent=1 // pred_check_branch
      %52 = sbr.rel (0) target = $region21
    $region20: #{comparison_fc_small_forward.1} parent=1 // pred_region
      _
    $region21: #{comparison_fc_small_forward.1} parent=1 // pred_fallthru
      _
    // Predicated region
    $region22: #{comparison_fc_small_forward.1} parent=1 // pred_check
      _
    $region23: #{comparison_fc_small_forward.1} parent=1 // pred_check_branch
      %54 = sbr.rel (0) target = $region25
    $region24: #{comparison_fc_small_forward.1} parent=1 // pred_region
      %s56 = ssub.s32 2048, 2048
      %57 = vsyncadd [#allocation8], %s56
      %s58 = sshll.u32 [#allocation7], 4
      %s59 = int_to_ptr.vmem [resolvable:$true] %s58
      %64 = dma.hbm_to_vmem [thread:$0]  %s5, 2048, %s59, [#allocation8], 128, 128, 8
    $region25: #{comparison_fc_small_forward.1} parent=1 // pred_fallthru
      _
    // Predicated region
    $region26: #{comparison_fc_small_forward.1} parent=1 // pred_check
      _
    $region27: #{comparison_fc_small_forward.1} parent=1 // pred_check_branch
      %66 = sbr.rel (0) target = $region29
    $region28: #{comparison_fc_small_forward.1} parent=1 // pred_region
      _
    $region29: #{comparison_fc_small_forward.1} parent=1 // pred_fallthru
      _
    // Predicated region
    $region30: #{comparison_fc_small_forward.1} parent=1 // pred_check
      _
    $region31: #{comparison_fc_small_forward.1} parent=1 // pred_check_branch
      %68 = sbr.rel (0) target = $region33
    $region32: #{comparison_fc_small_forward.1} parent=1 // pred_region
      %69 = dma.done [#allocation3], 128
    $region33: #{comparison_fc_small_forward.1} parent=1 // pred_fallthru
      _
    // Predicated region
    $region34: #{comparison_fc_small_forward.1} parent=1 // pred_check
      _
    $region35: #{comparison_fc_small_forward.1} parent=1 // pred_check_branch
      %71 = sbr.rel (0) target = $region37
    $region36: #{comparison_fc_small_forward.1} parent=1 // pred_region
      %72 = dma.done [#allocation5], 384
    $region37: #{comparison_fc_small_forward.1} parent=1 // pred_fallthru
      _
    // Predicated region
    $region38: #{comparison_fc_small_forward.1} parent=1 // pred_check
      _
    $region39: #{comparison_fc_small_forward.1} parent=1 // pred_check_branch
      %74 = sbr.rel (0) target = $region41
    $region40: #{comparison_fc_small_forward.1} parent=1 // pred_region
      %75 = dma.done [#allocation5], 2048
    $region41: #{comparison_fc_small_forward.1} parent=1 // pred_fallthru
      _
    // Predicated region
    $region42: #{comparison_fc_small_forward.1} parent=1 // pred_check
      _
    $region43: #{comparison_fc_small_forward.1} parent=1 // pred_check_branch
      %77 = sbr.rel (0) target = $region45
    $region44: #{comparison_fc_small_forward.1} parent=1 // pred_region
      %78 = dma.done [#allocation8], 2048
    $region45: #{comparison_fc_small_forward.1} parent=1 // pred_fallthru
      _
    %v79 = vld [vmem:[#allocation2] sm:$0xff]
    %v80 = vmax.f32 %v79, 0.0
    %v81 = vld [vmem:[#allocation4] sm:$0xff]
    %v82 = vld [vmem:[#allocation4 + $0x8] sm:$0xff]
    %v83 = vld [vmem:[#allocation4 + $0x10] sm:$0xf]
    %v84 = vld [vmem:[%s2] sm:$0x1]
    %v86 = vlaneseq
    %v87 = vshrl.u32 %v86, 7
    %v88 = vsub.s32 0, %v87
    %v89 = vrot.slane %v84, %v88
    %vm91 = vcmask 162816
    %v93 = vsel %vm91, %v80, 0
    %vm95 = vcmask 1043456
    %v97 = vsel %vm95, %v83, 0
    %99 = vmatprep.subr.mxu0 0.0
    %100 = vmatpush1.msra.mxu0 0.0
    %101 = vmatprep.subr.mxu0 0.0
    %102 = vmatpush1.msra.mxu0 0.0
    %103 = vmatprep.subr.mxu0 0.0
    %104 = vmatpush1.msra.mxu0 0.0
    %105 = vmatprep.subr.mxu0 0.0
    %106 = vmatpush1.msra.mxu0 0.0
    %107 = vmatprep.subr.mxu0 0.0
    %108 = vmatpush1.msra.mxu0 0.0
    %109 = vmatprep.subr.mxu0 0.0
    %110 = vmatpush1.msra.mxu0 0.0
    %111 = vmatprep.subr.mxu0 0.0
    %112 = vmatpush1.msra.mxu0 0.0
    %113 = vmatprep.subr.mxu0 0.0
    %114 = vmatpush1.msra.mxu0 0.0
    %115 = vmatprep.subr.mxu0 0.0
    %116 = vmatpush1.msra.mxu0 0.0
    %117 = vmatprep.subr.mxu0 0.0
    %118 = vmatpush1.msra.mxu0 0.0
    %119 = vmatprep.subr.mxu0 0.0
    %120 = vmatpush1.msra.mxu0 0.0
    %121 = vmatprep.subr.mxu0 0.0
    %122 = vmatpush1.msra.mxu0 0.0
    %123 = vmatprep.subr.mxu0 0.0
    %124 = vmatpush1.msra.mxu0 0.0
    %125 = vmatprep.subr.mxu0 0.0
    %126 = vmatpush1.msra.mxu0 %v97
    %127 = vmatprep.subr.mxu0 0.0
    %128 = vmatpush1.msra.mxu0 %v82
    %129 = vmatprep.subr.mxu0 0.0
    %130 = vmatpush1.msra.mxu0 %v81
    %131 = vmatprep.subr.mxu0 0.0
    %132 = vmatpush2.msra.mxu0 0.0
    %133 = vmatprep.subr.mxu0 0.0
    %134 = vmatpush2.msra.mxu0 0.0
    %135 = vmatprep.subr.mxu0 0.0
    %136 = vmatpush2.msra.mxu0 0.0
    %137 = vmatprep.subr.mxu0 0.0
    %138 = vmatpush2.msra.mxu0 0.0
    %139 = vmatprep.subr.mxu0 0.0
    %140 = vmatpush2.msra.mxu0 0.0
    %141 = vmatprep.subr.mxu0 0.0
    %142 = vmatpush2.msra.mxu0 0.0
    %143 = vmatprep.subr.mxu0 0.0
    %144 = vmatpush2.msra.mxu0 0.0
    %145 = vmatprep.subr.mxu0 0.0
    %146 = vmatpush2.msra.mxu0 0.0
    %147 = vmatprep.subr.mxu0 0.0
    %148 = vmatpush2.msra.mxu0 0.0
    %149 = vmatprep.subr.mxu0 0.0
    %150 = vmatpush2.msra.mxu0 0.0
    %151 = vmatprep.subr.mxu0 0.0
    %152 = vmatpush2.msra.mxu0 0.0
    %153 = vmatprep.subr.mxu0 0.0
    %154 = vmatpush2.msra.mxu0 0.0
    %155 = vmatprep.subr.mxu0 0.0
    %156 = vmatpush2.msra.mxu0 0.0
    %157 = vmatprep.subr.mxu0 0.0
    %158 = vmatpush2.msra.mxu0 0.0
    %159 = vmatprep.subr.mxu0 0.0
    %160 = vmatpush2.msra.mxu0 0.0
    %161 = vmatprep.subr.mxu0 0.0
    %162 = vmatpush2.msra.mxu0 0.0
    %163 = vmatprep.mubr.f32.mxu0 0.0
    %164 = vmatmul.mubr.f32.gmra.mxu0 %v93
    %v165 = vpop.f32.mrf.mxu0
    %v166 = vadd.f32 %v89, %v165
    %v167 = vpop.f32.mrf.mxu0
    %168 = vdwg.mxu0
    %v169 = vmax.f32 %v166, 0.0
    %v170 = vld [vmem:[#allocation6] sm:$0xff]
    %v171 = vld [vmem:[#allocation6 + $0x8] sm:$0xff]
    %v172 = vld [vmem:[#allocation6 + $0x10] sm:$0xff]
    %v173 = vld [vmem:[#allocation6 + $0x18] sm:$0xff]
    %v174 = vld [vmem:[#allocation6 + $0x20] sm:$0xff]
    %v175 = vld [vmem:[#allocation6 + $0x28] sm:$0xff]
    %v176 = vld [vmem:[#allocation6 + $0x30] sm:$0xff]
    %v177 = vld [vmem:[#allocation6 + $0x38] sm:$0xff]
    %v178 = vld [vmem:[#allocation6 + $0x40] sm:$0xff]
    %v179 = vld [vmem:[#allocation6 + $0x48] sm:$0xff]
    %v180 = vld [vmem:[#allocation6 + $0x50] sm:$0xff]
    %v181 = vld [vmem:[#allocation6 + $0x58] sm:$0xff]
    %v182 = vld [vmem:[#allocation6 + $0x60] sm:$0xff]
    %v183 = vld [vmem:[#allocation6 + $0x68] sm:$0xff]
    %v184 = vld [vmem:[#allocation6 + $0x70] sm:$0xff]
    %v185 = vld [vmem:[#allocation6 + $0x78] sm:$0xff]
    %v186 = vld [vmem:[%s4] sm:$0x1]
    %v188 = vlaneseq
    %v189 = vshrl.u32 %v188, 7
    %v190 = vsub.s32 0, %v189
    %v191 = vrot.slane %v186, %v190
    %193 = vmatprep.subr.mxu0 0.0
    %194 = vmatpush1.msra.mxu0 %v185
    %195 = vmatprep.subr.mxu0 0.0
    %196 = vmatpush1.msra.mxu0 %v184
    %197 = vmatprep.subr.mxu0 0.0
    %198 = vmatpush1.msra.mxu0 %v183
    %199 = vmatprep.subr.mxu0 0.0
    %200 = vmatpush1.msra.mxu0 %v182
    %201 = vmatprep.subr.mxu0 0.0
    %202 = vmatpush1.msra.mxu0 %v181
    %203 = vmatprep.subr.mxu0 0.0
    %204 = vmatpush1.msra.mxu0 %v180
    %205 = vmatprep.subr.mxu0 0.0
    %206 = vmatpush1.msra.mxu0 %v179
    %207 = vmatprep.subr.mxu0 0.0
    %208 = vmatpush1.msra.mxu0 %v178
    %209 = vmatprep.subr.mxu0 0.0
    %210 = vmatpush1.msra.mxu0 %v177
    %211 = vmatprep.subr.mxu0 0.0
    %212 = vmatpush1.msra.mxu0 %v176
    %213 = vmatprep.subr.mxu0 0.0
    %214 = vmatpush1.msra.mxu0 %v175
    %215 = vmatprep.subr.mxu0 0.0
    %216 = vmatpush1.msra.mxu0 %v174
    %217 = vmatprep.subr.mxu0 0.0
    %218 = vmatpush1.msra.mxu0 %v173
    %219 = vmatprep.subr.mxu0 0.0
    %220 = vmatpush1.msra.mxu0 %v172
    %221 = vmatprep.subr.mxu0 0.0
    %222 = vmatpush1.msra.mxu0 %v171
    %223 = vmatprep.subr.mxu0 0.0
    %224 = vmatpush1.msra.mxu0 %v170
    %225 = vmatprep.subr.mxu0 0.0
    %226 = vmatpush2.msra.mxu0 0.0
    %227 = vmatprep.subr.mxu0 0.0
    %228 = vmatpush2.msra.mxu0 0.0
    %229 = vmatprep.subr.mxu0 0.0
    %230 = vmatpush2.msra.mxu0 0.0
    %231 = vmatprep.subr.mxu0 0.0
    %232 = vmatpush2.msra.mxu0 0.0
    %233 = vmatprep.subr.mxu0 0.0
    %234 = vmatpush2.msra.mxu0 0.0
    %235 = vmatprep.subr.mxu0 0.0
    %236 = vmatpush2.msra.mxu0 0.0
    %237 = vmatprep.subr.mxu0 0.0
    %238 = vmatpush2.msra.mxu0 0.0
    %239 = vmatprep.subr.mxu0 0.0
    %240 = vmatpush2.msra.mxu0 0.0
    %241 = vmatprep.subr.mxu0 0.0
    %242 = vmatpush2.msra.mxu0 0.0
    %243 = vmatprep.subr.mxu0 0.0
    %244 = vmatpush2.msra.mxu0 0.0
    %245 = vmatprep.subr.mxu0 0.0
    %246 = vmatpush2.msra.mxu0 0.0
    %247 = vmatprep.subr.mxu0 0.0
    %248 = vmatpush2.msra.mxu0 0.0
    %249 = vmatprep.subr.mxu0 0.0
    %250 = vmatpush2.msra.mxu0 0.0
    %251 = vmatprep.subr.mxu0 0.0
    %252 = vmatpush2.msra.mxu0 0.0
    %253 = vmatprep.subr.mxu0 0.0
    %254 = vmatpush2.msra.mxu0 0.0
    %255 = vmatprep.subr.mxu0 0.0
    %256 = vmatpush2.msra.mxu0 0.0
    %257 = vmatprep.mubr.f32.mxu0 0.0
    %258 = vmatmul.mubr.f32.gmra.mxu0 %v169
    %v259 = vpop.f32.mrf.mxu0
    %v260 = vadd.f32 %v191, %v259
    %v261 = vpop.f32.mrf.mxu0
    %262 = vdwg.mxu0
    %v263 = vmax.f32 %v260, 0.0
    %v264 = vld [vmem:[#allocation7] sm:$0xff]
    %v265 = vld [vmem:[#allocation7 + $0x8] sm:$0xff]
    %v266 = vld [vmem:[#allocation7 + $0x10] sm:$0xff]
    %v267 = vld [vmem:[#allocation7 + $0x18] sm:$0xff]
    %v268 = vld [vmem:[#allocation7 + $0x20] sm:$0xff]
    %v269 = vld [vmem:[#allocation7 + $0x28] sm:$0xff]
    %v270 = vld [vmem:[#allocation7 + $0x30] sm:$0xff]
    %v271 = vld [vmem:[#allocation7 + $0x38] sm:$0xff]
    %v272 = vld [vmem:[#allocation7 + $0x40] sm:$0xff]
    %v273 = vld [vmem:[#allocation7 + $0x48] sm:$0xff]
    %v274 = vld [vmem:[#allocation7 + $0x50] sm:$0xff]
    %v275 = vld [vmem:[#allocation7 + $0x58] sm:$0xff]
    %v276 = vld [vmem:[#allocation7 + $0x60] sm:$0xff]
    %v277 = vld [vmem:[#allocation7 + $0x68] sm:$0xff]
    %v278 = vld [vmem:[#allocation7 + $0x70] sm:$0xff]
    %v279 = vld [vmem:[#allocation7 + $0x78] sm:$0xff]
    %v280 = vld [vmem:[%s6] sm:$0x1]
    %v282 = vlaneseq
    %v283 = vshrl.u32 %v282, 7
    %v284 = vsub.s32 0, %v283
    %v285 = vrot.slane %v280, %v284
    %287 = vmatprep.subr.mxu0 0.0
    %288 = vmatpush1.msra.mxu0 %v279
    %289 = vmatprep.subr.mxu0 0.0
    %290 = vmatpush1.msra.mxu0 %v278
    %291 = vmatprep.subr.mxu0 0.0
    %292 = vmatpush1.msra.mxu0 %v277
    %293 = vmatprep.subr.mxu0 0.0
    %294 = vmatpush1.msra.mxu0 %v276
    %295 = vmatprep.subr.mxu0 0.0
    %296 = vmatpush1.msra.mxu0 %v275
    %297 = vmatprep.subr.mxu0 0.0
    %298 = vmatpush1.msra.mxu0 %v274
    %299 = vmatprep.subr.mxu0 0.0
    %300 = vmatpush1.msra.mxu0 %v273
    %301 = vmatprep.subr.mxu0 0.0
    %302 = vmatpush1.msra.mxu0 %v272
    %303 = vmatprep.subr.mxu0 0.0
    %304 = vmatpush1.msra.mxu0 %v271
    %305 = vmatprep.subr.mxu0 0.0
    %306 = vmatpush1.msra.mxu0 %v270
    %307 = vmatprep.subr.mxu0 0.0
    %308 = vmatpush1.msra.mxu0 %v269
    %309 = vmatprep.subr.mxu0 0.0
    %310 = vmatpush1.msra.mxu0 %v268
    %311 = vmatprep.subr.mxu0 0.0
    %312 = vmatpush1.msra.mxu0 %v267
    %313 = vmatprep.subr.mxu0 0.0
    %314 = vmatpush1.msra.mxu0 %v266
    %315 = vmatprep.subr.mxu0 0.0
    %316 = vmatpush1.msra.mxu0 %v265
    %317 = vmatprep.subr.mxu0 0.0
    %318 = vmatpush1.msra.mxu0 %v264
    %319 = vmatprep.subr.mxu0 0.0
    %320 = vmatpush2.msra.mxu0 0.0
    %321 = vmatprep.subr.mxu0 0.0
    %322 = vmatpush2.msra.mxu0 0.0
    %323 = vmatprep.subr.mxu0 0.0
    %324 = vmatpush2.msra.mxu0 0.0
    %325 = vmatprep.subr.mxu0 0.0
    %326 = vmatpush2.msra.mxu0 0.0
    %327 = vmatprep.subr.mxu0 0.0
    %328 = vmatpush2.msra.mxu0 0.0
    %329 = vmatprep.subr.mxu0 0.0
    %330 = vmatpush2.msra.mxu0 0.0
    %331 = vmatprep.subr.mxu0 0.0
    %332 = vmatpush2.msra.mxu0 0.0
    %333 = vmatprep.subr.mxu0 0.0
    %334 = vmatpush2.msra.mxu0 0.0
    %335 = vmatprep.subr.mxu0 0.0
    %336 = vmatpush2.msra.mxu0 0.0
    %337 = vmatprep.subr.mxu0 0.0
    %338 = vmatpush2.msra.mxu0 0.0
    %339 = vmatprep.subr.mxu0 0.0
    %340 = vmatpush2.msra.mxu0 0.0
    %341 = vmatprep.subr.mxu0 0.0
    %342 = vmatpush2.msra.mxu0 0.0
    %343 = vmatprep.subr.mxu0 0.0
    %344 = vmatpush2.msra.mxu0 0.0
    %345 = vmatprep.subr.mxu0 0.0
    %346 = vmatpush2.msra.mxu0 0.0
    %347 = vmatprep.subr.mxu0 0.0
    %348 = vmatpush2.msra.mxu0 0.0
    %349 = vmatprep.subr.mxu0 0.0
    %350 = vmatpush2.msra.mxu0 0.0
    %351 = vmatprep.mubr.f32.mxu0 0.0
    %352 = vmatmul.mubr.f32.gmra.mxu0 %v263
    %v353 = vpop.f32.mrf.mxu0
    %v354 = vadd.f32 %v285, %v353
    %v355 = vpop.f32.mrf.mxu0
    %356 = vdwg.mxu0
    %v357 = vand.u32 2147483647, %v354
    %v358 = vsub.f32 0.0, %v357
    %v359 = vmul.f32 %v358, 1.442695
    %v360 = vpow.pop %v359
    %v361 = vadd.f32 %v360, 1.0
    %v362 = vlog2.pop %v361
    %v363 = vmul.f32 %v362, 0.6931472
    %v364 = vmul.f32 -0.5, %v360
    %v365 = vadd.f32 %v364, 1.0
    %v366 = vmul.f32 %v365, %v360
    %v367 = vand.u32 2147483647, %v360
    %vm368 = vcmp.lt.f32.partialorder %v367, 0.0004427343
    %v369 = vsel %vm368, %v366, %v363
    %v370 = vmax.f32 %v354, 0.0
    %v371 = vadd.f32 %v369, %v370
    %vm372 = vcmp.gt.f32.partialorder %v354, 20.0
    %v373 = vsel %vm372, %v354, %v371
    %374 = vst [vmem:[%s7] sm:$0xff] %v373
    // Predicated region
    $region46: #{comparison_fc_small_forward.1} parent=1 // pred_check
      _
    $region47: #{comparison_fc_small_forward.1} parent=1 // pred_check_branch
      %376 = sbr.rel (0) target = $region49
    $region48: #{comparison_fc_small_forward.1} parent=1 // pred_region
      _
    $region49: #{comparison_fc_small_forward.1} parent=1 // pred_fallthru
      _
    // Predicated region
    $region50: #{comparison_fc_small_forward.1} parent=1 // pred_check
      _
    $region51: #{comparison_fc_small_forward.1} parent=1 // pred_check_branch
      %378 = sbr.rel (0) target = $region53
    $region52: #{comparison_fc_small_forward.1} parent=1 // pred_region
      _
    $region53: #{comparison_fc_small_forward.1} parent=1 // pred_fallthru
      _
    %379 = vsyncpa [#allocation3], 1
    %380 = vsyncpa [#allocation5], 1
    %381 = vsyncpa [#allocation8], 1

</llo_original>
